<compile_context>
chip_gen: v6e
topology: v6e:2x2x1
jax: 0.10.0
libtpu: 0.0.40
codegen_flags: <defaults>
</compile_context>

<pallas_src>
import functools
import math

import numpy as np
import jax
import jax.numpy as jnp
from jax.experimental import pallas as pl
from jax.experimental.pallas import tpu as pltpu

_MAX_UNROLLED_SLICES = 64   # bound on the statically unrolled per-slice loop


# ---------------------------------------------------------------------------
# Interpolation-matrix construction (host-side, plain numpy).  Reproduces
# torch's area_pixel_compute_source_index for the linear modes.  With an
# explicit scale_factor, torch (recompute_scale_factor=False) uses
# 1/scale_factor as the step, so we do too.
# ---------------------------------------------------------------------------
def _linear_interp_matrix(out_size, in_size, scale_factor=None, align_corners=False):
    i = np.arange(out_size, dtype=np.float64)
    if align_corners:
        scale = (in_size - 1) / (out_size - 1) if out_size > 1 else 0.0
        src = scale * i
    else:
        step = (1.0 / scale_factor) if scale_factor is not None else (in_size / out_size)
        src = step * (i + 0.5) - 0.5
        src = np.maximum(src, 0.0)          # torch clamps negative src to 0
    idx0 = np.minimum(np.floor(src).astype(np.int64), in_size - 1)
    idx1 = np.minimum(idx0 + 1, in_size - 1)
    lam1 = src - idx0
    lam0 = 1.0 - lam1
    mat = np.zeros((out_size, in_size), dtype=np.float64)
    np.add.at(mat, (np.arange(out_size), idx0), lam0)
    np.add.at(mat, (np.arange(out_size), idx1), lam1)
    return mat


# ---------------------------------------------------------------------------
# Pallas kernel.  Per grid step:
#   x_ref  : (tbc*H_in,  W_in)        compute dtype
#   wh_ref : (H_out, H_in)            row-permuted for packed output if ko > 1
#   wwt_ref: (W_in,  W_out)           pre-transposed in the wrapper
#   o_ref  : (tbc*(H_out/ko), ko*W_out) lane-dense output slab
# ---------------------------------------------------------------------------
def _upsample_kernel(x_ref, wh_ref, wwt_ref, o_ref, *, tbc, h_in, hpk, ko, w_out):
    # Width pass: one tall MXU matmul, M = tbc*h_in, f32 accumulation.
    t = jnp.dot(x_ref[...], wwt_ref[...], preferred_element_type=jnp.float32)
    t = t.astype(x_ref.dtype)                              # (tbc*h_in, w_out)

    wh = wh_ref[...]                                       # hoisted, stays stationary on MXU

    # Height pass: per-slice 2-D matmul; no tbc-wide weight broadcast and no
    # full-block f32 intermediate (only one (h_out, w_out) tile live at a time).
    for n in range(tbc):                                   # tbc is compile-time constant
        t_n = t[n * h_in:(n + 1) * h_in, :]                # static, sublane-aligned slice
        y = jnp.dot(wh, t_n, preferred_element_type=jnp.float32)
        y = y.astype(o_ref.dtype)                          # (h_out, w_out)
        if ko > 1:
            # Pack ko output rows per lane row -> (hpk, ko*w_out): dense,
            # full-width (unmasked) stores and dense output DMA.
            y = jnp.concatenate(
                [y[j * hpk:(j + 1) * hpk, :] for j in range(ko)], axis=-1)
        o_ref[n * hpk:(n + 1) * hpk, :] = y


# ---------------------------------------------------------------------------
# Sizing helpers.
# ---------------------------------------------------------------------------
def _ceil_to(x, m):
    return ((x + m - 1) // m) * m


def _pad2_bytes(rows, cols, itemsize):
    # VMEM footprint of a 2-D buffer with sublane/lane padding.
    return _ceil_to(max(rows, 1), 8) * _ceil_to(max(cols, 1), 128) * itemsize


def _vmem_capacity_bytes():
    try:
        info = pltpu.get_tpu_info()
        for name in ("vmem_capacity_bytes", "vmem_bytes", "vmem_size_bytes"):
            cap = getattr(info, name, None)
            if cap:
                return int(cap)
    except Exception:
        pass
    return 64 * 1024 * 1024     # conservative fallback (v7x per-TensorCore VMEM)


def _choose_packing(h_out, w_out):
    """Output-row packing factor ko: ko*w_out % 128 == 0 for lane-dense stores."""
    if w_out % 128 == 0:
        return 1
    ko = 128 // math.gcd(w_out, 128)
    if ko > 1 and h_out % ko == 0 and (h_out // ko) % 8 == 0:
        return ko
    return 1


def _choose_tbc(bc, h_in, w_in, h_out, w_out, ko, c_isz, o_isz, budget,
                max_unroll=_MAX_UNROLLED_SLICES):
    """Largest batch*channel tile that is shape-legal, sublane-aligned, fits the
    per-chip VMEM budget, and leaves a well-shaped grid (even, >= 4 steps)."""
    hpk = h_out // ko

    def fits(tbc):
        in_blk = _pad2_bytes(tbc * h_in, w_in, c_isz)
        out_blk = _pad2_bytes(tbc * hpk, ko * w_out, o_isz)
        w_bytes = _pad2_bytes(h_out, h_in, c_isz) + _pad2_bytes(w_in, w_out, c_isz)
        live = (_pad2_bytes(tbc * h_in, w_out, 4)          # width-pass result
                + _pad2_bytes(h_out, w_out, 4)             # per-slice height result
                + _pad2_bytes(hpk, ko * w_out, 4))         # packed row block
        # 2x: double-buffered pipeline copies of the data blocks AND (for now)
        # of the constant-index weight blocks.
        return 2 * in_blk + 2 * out_blk + 2 * w_bytes + live <= budget

    def shape_legal(tbc):
        if bc % tbc:
            return False
        if tbc == bc:
            return True
        return (tbc * h_in) % 8 == 0 and (tbc * hpk) % 8 == 0

    def aligned(tbc):
        # In-kernel per-slice slicing is relayout-free only if each slice is
        # sublane-aligned.
        return tbc == 1 or (h_in % 8 == 0 and hpk % 8 == 0)

    def grid_tier(tbc):
        g = bc // tbc
        if g >= 4 and g % 2 == 0:
            return 0            # >= 2 pipelined steps per v7x TensorCore
        if g >= 2 and g % 2 == 0:
            return 1
        if g >= 2:
            return 2
        return 3

    divisors = [d for d in range(1, bc + 1) if bc % d == 0]

    for require_aligned in (True, False):
        cands = [d for d in divisors
                 if d <= max_unroll and shape_legal(d) and fits(d)
                 and (aligned(d) or not require_aligned)]
        if cands:
            best = min(grid_tier(d) for d in cands)
            return max(d for d in cands if grid_tier(d) == best)

    # Nothing fits the VMEM budget: pick the SMALLEST shape-legal divisor
    # (never the largest block).  TODO(synk): spatial (H) tiling for this case.
    legal = [d for d in divisors if shape_legal(d)]
    return min(legal) if legal else bc


# ---------------------------------------------------------------------------
# Public wrapper: DistributedUpsample.forward on a single (serial) partition.
# ---------------------------------------------------------------------------
def distributed_upsample(x, size=None, scale_factor=None, mode="bilinear",
                         align_corners=False, compute_dtype=None):
    if mode not in ("linear", "bilinear"):
        raise NotImplementedError("Only the linear/bilinear family is implemented.")
    if (size is None) == (scale_factor is None):
        raise ValueError("Exactly one of `size` or `scale_factor` must be set.")

    B, C, H, W = x.shape
    if size is not None:
        H_out, W_out = int(size[-2]), int(size[-1])
        sf = None
    else:
        H_out = int(np.floor(H * scale_factor))
        W_out = int(np.floor(W * scale_factor))
        sf = float(scale_factor)
    BC = B * C

    out_dtype = x.dtype
    cdt = jnp.dtype(compute_dtype) if compute_dtype is not None else jnp.dtype(x.dtype)
    c_isz = cdt.itemsize
    o_isz = jnp.dtype(out_dtype).itemsize

    # Output-row packing for lane density.
    ko = _choose_packing(H_out, W_out)
    hpk = H_out // ko

    # Host-built interpolation matrices; wwt pre-transposed (no in-kernel .T),
    # wh row-permuted so the packed stores are contiguous value slices.
    wh_np = _linear_interp_matrix(H_out, H, sf, align_corners)
    ww_np = _linear_interp_matrix(W_out, W, sf, align_corners)
    if ko > 1:
        wh_np = wh_np.reshape(hpk, ko, H).transpose(1, 0, 2).reshape(H_out, H)
    wh = jnp.asarray(wh_np, dtype=cdt)
    wwt = jnp.asarray(ww_np.T, dtype=cdt)

    # Per-generation VMEM budgets (v5e/v6e 128 MiB -> 64/96 MiB; v7x 64 -> 32/48).
    vmem_cap = _vmem_capacity_bytes()
    tile_budget = vmem_cap // 2
    vmem_limit = (3 * vmem_cap) // 4

    tbc = _choose_tbc(BC, H, W, H_out, W_out, ko, c_isz, o_isz, tile_budget)
    grid = (BC // tbc,)

    # 2-D lane-dense slabs; reshapes/casts in the wrapper are cheap XLA ops.
    x2 = x.reshape(BC * H, W).astype(cdt)

    flops = 2 * BC * H * W * W_out + 2 * BC * H_out * H * W_out
    bytes_accessed = (BC * H * W * c_isz + BC * H_out * W_out * o_isz
                      + (H_out * H + W * W_out) * c_isz)      # weights fetched once

    kernel = functools.partial(_upsample_kernel, tbc=tbc, h_in=H, hpk=hpk,
                               ko=ko, w_out=W_out)

    out2 = pl.pallas_call(
        kernel,
        out_shape=jax.ShapeDtypeStruct((BC * hpk, ko * W_out), out_dtype),
        grid_spec=pltpu.PrefetchScalarGridSpec(
            num_scalar_prefetch=0,
            grid=grid,
            in_specs=[
                pl.BlockSpec((tbc * H, W), lambda n: (n, 0)),
                pl.BlockSpec((H_out, H), lambda n: (0, 0)),
                pl.BlockSpec((W, W_out), lambda n: (0, 0)),
            ],
            out_specs=pl.BlockSpec((tbc * hpk, ko * W_out), lambda n: (n, 0)),
        ),
        compiler_params=pltpu.CompilerParams(
            dimension_semantics=("parallel",),
            vmem_limit_bytes=int(vmem_limit),
        ),
        cost_estimate=pl.CostEstimate(
            flops=int(flops), transcendentals=0, bytes_accessed=int(bytes_accessed)),
    )(x2, wh, wwt)

    # Row-major relabeling: (BC*H_out/ko, ko*W_out) -> (B, C, H_out, W_out) is free.
    return out2.reshape(B, C, H_out, W_out)


# ---------------------------------------------------------------------------
# Independent pure-JAX reference (gather-based, torch bilinear semantics).
# ---------------------------------------------------------------------------
def _ref_bilinear_upsample(x, scale_factor=2.0, align_corners=False):
    B, C, H, W = x.shape
    H_out = int(np.floor(H * scale_factor))
    W_out = int(np.floor(W * scale_factor))

    def src(out_size, in_size):
        i = jnp.arange(out_size, dtype=jnp.float32)
        if align_corners:
            scale = (in_size - 1) / max(out_size - 1, 1)
            return scale * i
        s = (1.0 / scale_factor) * (i + 0.5) - 0.5
        return jnp.maximum(s, 0.0)

    sh = src(H_out, H)
    sw = src(W_out, W)
    h0 = jnp.clip(jnp.floor(sh).astype(jnp.int32), 0, H - 1)
    h1 = jnp.minimum(h0 + 1, H - 1)
    w0 = jnp.clip(jnp.floor(sw).astype(jnp.int32), 0, W - 1)
    w1 = jnp.minimum(w0 + 1, W - 1)
    lh = (sh - h0.astype(jnp.float32))[None, None, :, None]
    lw = (sw - w0.astype(jnp.float32))[None, None, None, :]

    xh = x[:, :, h0, :] * (1.0 - lh) + x[:, :, h1, :] * lh
    out = xh[:, :, :, w0] * (1.0 - lw) + xh[:, :, :, w1] * lw
    return out


if __name__ == "__main__":
    key = jax.random.PRNGKey(0)
    B, C, H, W = 2, 4, 16, 16
    x = jax.random.normal(key, (B, C, H, W), dtype=jnp.float32)

    y = distributed_upsample(x, scale_factor=2.0, mode="bilinear",
                             align_corners=False)
    y = jax.block_until_ready(y)

    y_ref = jax.block_until_ready(
        _ref_bilinear_upsample(x, scale_factor=2.0, align_corners=False))

    assert y.shape == (B, C, 2 * H, 2 * W), y.shape
    assert y.dtype == x.dtype, y.dtype
    np.testing.assert_allclose(np.asarray(y), np.asarray(y_ref),
                               rtol=1e-5, atol=1e-5)

    # bf16 MXU fast path (f32 accumulation), checked with a loose tolerance.
    y_bf16 = jax.block_until_ready(
        distributed_upsample(x, scale_factor=2.0, mode="bilinear",
                             align_corners=False, compute_dtype=jnp.bfloat16))
    assert y_bf16.shape == (B, C, 2 * H, 2 * W)
    np.testing.assert_allclose(np.asarray(y_bf16), np.asarray(y_ref),
                               rtol=3e-2, atol=3e-2)

    print("KERNEL_OK")
</pallas_src>

<mosaic_0001>
module attributes {stable_mosaic.version = 11 : i64} {
  func.func @_upsample_kernel(%arg0: i32, %arg1: memref<32x16xf32, #tpu.memory_space<vmem>>, %arg2: memref<32x16xf32, #tpu.memory_space<vmem>>, %arg3: memref<16x32xf32, #tpu.memory_space<vmem>>, %arg4: memref<16x128xf32, #tpu.memory_space<vmem>>) attributes {dimension_semantics = [#tpu.dimension_semantics<parallel>], iteration_bounds = array<i64: 4>, scalar_prefetch = 0 : i64, scratch_operands = 0 : i64, tpu.core_type = #tpu.core_type<tc>, window_params = [{transform_indices = @transform_0, window_bounds = array<i64: 32, 16>}, {pipeline_mode = #tpu.pipeline_mode<synchronous>, transform_indices = @transform_1, window_bounds = array<i64: 32, 16>}, {pipeline_mode = #tpu.pipeline_mode<synchronous>, transform_indices = @transform_2, window_bounds = array<i64: 16, 32>}, {transform_indices = @transform_3, window_bounds = array<i64: 16, 128>}]} {
    %c0 = arith.constant 0 : index
    %c0_0 = arith.constant 0 : index
    %0 = vector.load %arg1[%c0, %c0_0] : memref<32x16xf32, #tpu.memory_space<vmem>>, vector<32x16xf32>
    %c0_1 = arith.constant 0 : index
    %c0_2 = arith.constant 0 : index
    %1 = vector.load %arg3[%c0_1, %c0_2] : memref<16x32xf32, #tpu.memory_space<vmem>>, vector<16x32xf32>
    %cst = arith.constant dense<0.000000e+00> : vector<32x32xf32>
    %2 = tpu.matmul %0, %1, %cst {dimension_numbers = #tpu.dot_dimension_numbers<[1], [0], [0], [1], [0, 0, 1, 1], [], []>} : vector<32x16xf32>, vector<16x32xf32>, vector<32x32xf32> -> vector<32x32xf32>
    %c0_3 = arith.constant 0 : index
    %c0_4 = arith.constant 0 : index
    %3 = vector.load %arg2[%c0_3, %c0_4] : memref<32x16xf32, #tpu.memory_space<vmem>>, vector<32x16xf32>
    %4 = vector.extract_strided_slice %2 {offsets = [0, 0], sizes = [16, 32], strides = [1, 1]} : vector<32x32xf32> to vector<16x32xf32>
    %cst_5 = arith.constant dense<0.000000e+00> : vector<32x32xf32>
    %5 = tpu.matmul %3, %4, %cst_5 {dimension_numbers = #tpu.dot_dimension_numbers<[1], [0], [0], [1], [0, 0, 1, 1], [], []>} : vector<32x16xf32>, vector<16x32xf32>, vector<32x32xf32> -> vector<32x32xf32>
    %6 = vector.extract_strided_slice %5 {offsets = [0, 0], sizes = [8, 32], strides = [1, 1]} : vector<32x32xf32> to vector<8x32xf32>
    %7 = vector.extract_strided_slice %5 {offsets = [8, 0], sizes = [8, 32], strides = [1, 1]} : vector<32x32xf32> to vector<8x32xf32>
    %8 = vector.extract_strided_slice %5 {offsets = [16, 0], sizes = [8, 32], strides = [1, 1]} : vector<32x32xf32> to vector<8x32xf32>
    %9 = vector.extract_strided_slice %5 {offsets = [24, 0], sizes = [8, 32], strides = [1, 1]} : vector<32x32xf32> to vector<8x32xf32>
    %10 = tpu.concatenate %6, %7, %8, %9 in 1 : vector<8x32xf32>, vector<8x32xf32>, vector<8x32xf32>, vector<8x32xf32> -> vector<8x128xf32>
    %c0_6 = arith.constant 0 : index
    %c0_7 = arith.constant 0 : index
    %11 = vector.load %arg4[%c0_6, %c0_7] : memref<16x128xf32, #tpu.memory_space<vmem>>, vector<8x128xf32>
    tpu.vector_store %arg4[%c0_6, %c0_7], %10 {strides = array<i32>} : memref<16x128xf32, #tpu.memory_space<vmem>>, vector<8x128xf32>,
    %12 = vector.extract_strided_slice %2 {offsets = [16, 0], sizes = [16, 32], strides = [1, 1]} : vector<32x32xf32> to vector<16x32xf32>
    %cst_8 = arith.constant dense<0.000000e+00> : vector<32x32xf32>
    %13 = tpu.matmul %3, %12, %cst_8 {dimension_numbers = #tpu.dot_dimension_numbers<[1], [0], [0], [1], [0, 0, 1, 1], [], []>} : vector<32x16xf32>, vector<16x32xf32>, vector<32x32xf32> -> vector<32x32xf32>
    %14 = vector.extract_strided_slice %13 {offsets = [0, 0], sizes = [8, 32], strides = [1, 1]} : vector<32x32xf32> to vector<8x32xf32>
    %15 = vector.extract_strided_slice %13 {offsets = [8, 0], sizes = [8, 32], strides = [1, 1]} : vector<32x32xf32> to vector<8x32xf32>
    %16 = vector.extract_strided_slice %13 {offsets = [16, 0], sizes = [8, 32], strides = [1, 1]} : vector<32x32xf32> to vector<8x32xf32>
    %17 = vector.extract_strided_slice %13 {offsets = [24, 0], sizes = [8, 32], strides = [1, 1]} : vector<32x32xf32> to vector<8x32xf32>
    %18 = tpu.concatenate %14, %15, %16, %17 in 1 : vector<8x32xf32>, vector<8x32xf32>, vector<8x32xf32>, vector<8x32xf32> -> vector<8x128xf32>
    %c8 = arith.constant 8 : index
    %c0_9 = arith.constant 0 : index
    %19 = vector.load %arg4[%c8, %c0_9] : memref<16x128xf32, #tpu.memory_space<vmem>>, vector<8x128xf32>
    tpu.vector_store %arg4[%c8, %c0_9], %18 {strides = array<i32>} : memref<16x128xf32, #tpu.memory_space<vmem>>, vector<8x128xf32>,
    return
  }
  func.func @transform_0(%arg0: i32) -> (i32, i32) {
    %c0_i32 = arith.constant 0 : i32
    %c0_i32_0 = arith.constant 0 : i32
    return %arg0, %c0_i32 : i32, i32
  }
  func.func @transform_1(%arg0: i32) -> (i32, i32) {
    %c0_i32 = arith.constant 0 : i32
    %c0_i32_0 = arith.constant 0 : i32
    %c0_i32_1 = arith.constant 0 : i32
    return %c0_i32, %c0_i32_0 : i32, i32
  }
  func.func @transform_2(%arg0: i32) -> (i32, i32) {
    %c0_i32 = arith.constant 0 : i32
    %c0_i32_0 = arith.constant 0 : i32
    %c0_i32_1 = arith.constant 0 : i32
    return %c0_i32, %c0_i32_0 : i32, i32
  }
  func.func @transform_3(%arg0: i32) -> (i32, i32) {
    %c0_i32 = arith.constant 0 : i32
    %c0_i32_0 = arith.constant 0 : i32
    return %arg0, %c0_i32 : i32, i32
  }
}

</mosaic_0001>

<llo_original>
// kernel: tpu_custom_call.1
$region0: #{tpu_custom_call.1}
  #allocation0 [shape = 'u32[]', space=smem, size = 0x4, offset = 0x4, fixed_abs, tag = 'smem constant byte address 0x4 - core index']
  #allocation1 [shape = 'u32[144,128]{1,0:T(1,128)}', space=vmem, size = 0x12000, scoped, tag = 'internal scratch']
  %s0 = inlined_call_operand.vmem [shape: f32[128,16], index: 0, kind: input, shape index: {}]
  %s1 = inlined_call_operand.vmem [shape: f32[32,16], index: 1, kind: input, shape index: {}]
  %s2 = inlined_call_operand.vmem [shape: f32[16,32], index: 2, kind: input, shape index: {}]
  %s3 = inlined_call_operand.hbm [shape: f32[64,128], index: 3, kind: output, shape index: {}]
  %s4 = sld [smem:[#allocation0]]
  $region45: #{tpu_custom_call.1} parent=0
    _
  %s6 = ssub.s32 1, %s4
  %s7 = scalar_select 0, %s6, %s4
  $region1: #{tpu_custom_call.1} parent=0
    #allocation2 [shape = 'u8[16384]{0}', space=vmem, size = 0x4000, scoped, tag = 'output window, operand 0']
    #allocation3 [shape = 's32[2]{0}', space=sflag, size = 0x8, scoped, tag = 'scoped memory for tpu_custom_call.1']
    %8 = vsyncpa [#allocation3], 0
    %s9 = scalar_lea.sflag [#allocation3], 1
    %10 = vsyncpa %s9, 0
    loop: start=0, step=1, limit=6
    $region2: #{tpu_custom_call.1} parent=1 // loop_pre_header
      _
    $region3: #{tpu_custom_call.1} parent=1 // loop_header
      %s12 = sphi 0, %s16
      %p13 = scmp.ge.s32.totalorder %s12, 6
      %s22 = sphi 0, %s24
      %s25 = sphi 0, %s22
      %s26 = sphi 0, %s25
      %s42 = sphi 0, %s26
      %s46 = sphi 0, %s46
      %s48 = sphi 0, %s46
      %s49 = sphi 0, %s48
      %s63 = sphi 0, %s49
      %s67 = sphi 0, %s67
      %s69 = sphi 0, %s67
      %s70 = sphi 0, %s69
      %s84 = sphi 0, %s70
      %s90 = sphi 0, %s92
      %s93 = sphi 0, %s90
      %s94 = sphi 0, %s93
      %s110 = sphi 0, %s94
    $region4: #{tpu_custom_call.1} parent=1 // loop_header_branch
      %15 = sbr.rel (%p13) target = $region8
    $region5: #{tpu_custom_call.1} parent=1 // loop_body
      %s17 = ssub.s32 %s12, 1
      %s18 = ssub.s32 %s12, 2
      %s19 = sadd.s32 %s12, 1
      %s20 = ssub.s32 %s12, %s19
      %p21 = scmp.eq.s32.totalorder %s20, 0
      %s23 = sadd.s32 %s22, 1
      %s24 = scalar_select %p21, %s22, %s23
      %p27 = pneg %p21
      %p28 = scmp.eq.s32.totalorder %s12, 3
      %p29 = por %p27, %p28
      %p30 = scmp.ne.s32.totalorder %s22, %s25
      %p31 = scmp.eq.s32.totalorder %s12, 0
      %p32 = por %p30, %p31
      %p33 = scmp.ne.s32.totalorder %s22, %s25
      %p34 = scmp.eq.s32.totalorder %s17, 3
      %p35 = por %p33, %p34
      %p36 = scmp.ne.s32.totalorder %s25, %s26
      %p37 = scmp.eq.s32.totalorder %s17, 0
      %p38 = por %p36, %p37
      %p39 = scmp.ne.s32.totalorder %s25, %s26
      %p40 = scmp.eq.s32.totalorder %s18, 3
      %p41 = por %p39, %p40
      %p43 = scmp.ne.s32.totalorder %s26, %s42
      %p44 = scmp.eq.s32.totalorder %s18, 0
      %p45 = por %p43, %p44
      %s47 = sadd.s32 %s46, 1
      %p50 = scmp.eq.s32.totalorder %s12, 3
      %p51 = scmp.ne.s32.totalorder %s46, %s48
      %p52 = scmp.eq.s32.totalorder %s12, 0
      %p53 = por %p51, %p52
      %p54 = scmp.ne.s32.totalorder %s46, %s48
      %p55 = scmp.eq.s32.totalorder %s17, 3
      %p56 = por %p54, %p55
      %p57 = scmp.ne.s32.totalorder %s48, %s49
      %p58 = scmp.eq.s32.totalorder %s17, 0
      %p59 = por %p57, %p58
      %p60 = scmp.ne.s32.totalorder %s48, %s49
      %p61 = scmp.eq.s32.totalorder %s18, 3
      %p62 = por %p60, %p61
      %p64 = scmp.ne.s32.totalorder %s49, %s63
      %p65 = scmp.eq.s32.totalorder %s18, 0
      %p66 = por %p64, %p65
      %s68 = sadd.s32 %s67, 1
      %p71 = scmp.eq.s32.totalorder %s12, 3
      %p72 = scmp.ne.s32.totalorder %s67, %s69
      %p73 = scmp.eq.s32.totalorder %s12, 0
      %p74 = por %p72, %p73
      %p75 = scmp.ne.s32.totalorder %s67, %s69
      %p76 = scmp.eq.s32.totalorder %s17, 3
      %p77 = por %p75, %p76
      %p78 = scmp.ne.s32.totalorder %s69, %s70
      %p79 = scmp.eq.s32.totalorder %s17, 0
      %p80 = por %p78, %p79
      %p81 = scmp.ne.s32.totalorder %s69, %s70
      %p82 = scmp.eq.s32.totalorder %s18, 3
      %p83 = por %p81, %p82
      %p85 = scmp.ne.s32.totalorder %s70, %s84
      %p86 = scmp.eq.s32.totalorder %s18, 0
      %p87 = por %p85, %p86
      %s88 = ssub.s32 %s12, %s19
      %p89 = scmp.eq.s32.totalorder %s88, 0
      %s91 = sadd.s32 %s90, 1
      %s92 = scalar_select %p89, %s90, %s91
      %p95 = pneg %p89
      %p96 = scmp.eq.s32.totalorder %s12, 3
      %p97 = por %p95, %p96
      %p98 = scmp.ne.s32.totalorder %s90, %s93
      %p99 = scmp.eq.s32.totalorder %s12, 0
      %p100 = por %p98, %p99
      %p101 = scmp.ne.s32.totalorder %s90, %s93
      %p102 = scmp.eq.s32.totalorder %s17, 3
      %p103 = por %p101, %p102
      %p104 = scmp.ne.s32.totalorder %s93, %s94
      %p105 = scmp.eq.s32.totalorder %s17, 0
      %p106 = por %p104, %p105
      %p107 = scmp.ne.s32.totalorder %s93, %s94
      %p108 = scmp.eq.s32.totalorder %s18, 3
      %p109 = por %p107, %p108
      %p111 = scmp.ne.s32.totalorder %s94, %s110
      %p112 = scmp.eq.s32.totalorder %s18, 0
      %p113 = por %p111, %p112
      %p114 = scmp.le.s32.totalorder 1, %s12
      %p115 = scmp.lt.s32.totalorder %s12, 5
      %p116 = pnand %p114, %p115
      %p117 = pneg %p116
      // Predicated region
      $region9: #{tpu_custom_call.1} parent=5 // pred_check
        _
      $region10: #{tpu_custom_call.1} parent=5 // pred_check_branch
        %119 = sbr.rel (%p116) target = $region12
      $region11: #{tpu_custom_call.1} parent=5 // pred_region
        %s120 = ssub.s32 %s12, 1
        // Predicated region
        $region13: #{tpu_custom_call.1} parent=11 // pred_check
          %p121 = pneg %p59
        $region14: #{tpu_custom_call.1} parent=11 // pred_check_branch
          %123 = sbr.rel (%p121) target = $region16
        $region15: #{tpu_custom_call.1} parent=11 // pred_region
          _
        $region16: #{tpu_custom_call.1} parent=11 // pred_fallthru
          _
        // Predicated region
        $region17: #{tpu_custom_call.1} parent=11 // pred_check
          %p124 = pneg %p80
        $region18: #{tpu_custom_call.1} parent=11 // pred_check_branch
          %126 = sbr.rel (%p124) target = $region20
        $region19: #{tpu_custom_call.1} parent=11 // pred_region
          _
        $region20: #{tpu_custom_call.1} parent=11 // pred_fallthru
          _
      $region12: #{tpu_custom_call.1} parent=5 // pred_fallthru
        _
      %p127 = scmp.lt.s32.totalorder %s12, 4
      // Predicated region
      $region21: #{tpu_custom_call.1} parent=5 // pred_check
        %p128 = pneg %p127
      $region22: #{tpu_custom_call.1} parent=5 // pred_check_branch
        %130 = sbr.rel (%p128) target = $region24
      $region23: #{tpu_custom_call.1} parent=5 // pred_region
        // Predicated region
        $region25: #{tpu_custom_call.1} parent=23 // pred_check
          %p131 = pneg %p32
        $region26: #{tpu_custom_call.1} parent=23 // pred_check_branch
          %133 = sbr.rel (%p131) target = $region28
        $region27: #{tpu_custom_call.1} parent=23 // pred_region
          %s134 = smul.u32 4, %s12
          %p135 = scmp.lt.s32.totalorder %s134, 15
          %s136 = scalar_select %p135, %s134, 15
          %s137 = smul.addr %s136, 8
          %s138 = scalar_lea.vmem %s0, %s137
          %s139 = smul.u32 4, %s12
        $region28: #{tpu_custom_call.1} parent=23 // pred_fallthru
          _
      $region24: #{tpu_custom_call.1} parent=5 // pred_fallthru
        _
      %p140 = scmp.le.s32.totalorder 1, %s12
      %p141 = scmp.lt.s32.totalorder %s12, 5
      %p142 = pnand %p140, %p141
      %p143 = pneg %p142
      // Predicated region
      $region29: #{tpu_custom_call.1} parent=5 // pred_check
        _
      $region30: #{tpu_custom_call.1} parent=5 // pred_check_branch
        %145 = sbr.rel (%p142) target = $region32
      $region31: #{tpu_custom_call.1} parent=5 // pred_region
        %s146 = ssub.s32 %s12, 1
        %s147 = smul.u32 4, %s17
        %p148 = scmp.lt.s32.totalorder %s147, 15
        %s149 = scalar_select %p148, %s147, 15
        %s150 = smul.addr %s149, 8
        %s151 = scalar_lea.vmem %s0, %s150
        %p152 = pneg %p38
        %p153 = pneg %p35
        %p154 = pneg %p59
        %p155 = pneg %p56
        %p156 = pneg %p80
        %p157 = pneg %p77
        %p158 = pneg %p106
        %p159 = pneg %p103
        %s160 = sand.u32 %s93, 1
        %s161 = scalar_lea.sflag [#allocation3], %s160
        %s162 = sand.u32 %s93, 1
        %s163 = smul.addr %s162, 16
        %s164 = scalar_lea.vmem [#allocation2], %s163
        %s165 = smul.u32 4, %s17
        %p166 = scmp.lt.s32.totalorder %s165, 15
        %s167 = scalar_select %p166, %s165, 15
        %s168 = smul.addr %s167, 8
        %s169 = scalar_lea.vmem %s0, %s168
        %s170 = smul.u32 4, %s17
        %s171 = smul.u32 2, %s17
        %v172 = vld [vmem:[%s169] sm:$0xff]
        %v173 = vld [vmem:[%s169 + $0x8] sm:$0xff]
        %v174 = vld [vmem:[%s169 + $0x10] sm:$0xff]
        %v175 = vld [vmem:[%s169 + $0x18] sm:$0xff]
        %v176 = vld [vmem:[%s2] sm:$0xff]
        %v177 = vld [vmem:[%s2 + $0x8] sm:$0xff]
        %vm178 = vcmask 130048
        %v180 = vsel %vm178, %v172, 0
        %v183 = vsel %vm178, %v173, 0
        %v186 = vsel %vm178, %v174, 0
        %v189 = vsel %vm178, %v175, 0
        %191 = vmatprep.subr.mxu0 0.0
        %192 = vmatpush1.msra.mxu0 0.0
        %193 = vmatprep.subr.mxu0 0.0
        %194 = vmatpush1.msra.mxu0 0.0
        %195 = vmatprep.subr.mxu0 0.0
        %196 = vmatpush1.msra.mxu0 0.0
        %197 = vmatprep.subr.mxu0 0.0
        %198 = vmatpush1.msra.mxu0 0.0
        %199 = vmatprep.subr.mxu0 0.0
        %200 = vmatpush1.msra.mxu0 0.0
        %201 = vmatprep.subr.mxu0 0.0
        %202 = vmatpush1.msra.mxu0 0.0
        %203 = vmatprep.subr.mxu0 0.0
        %204 = vmatpush1.msra.mxu0 0.0
        %205 = vmatprep.subr.mxu0 0.0
        %206 = vmatpush1.msra.mxu0 0.0
        %207 = vmatprep.subr.mxu0 0.0
        %208 = vmatpush1.msra.mxu0 0.0
        %209 = vmatprep.subr.mxu0 0.0
        %210 = vmatpush1.msra.mxu0 0.0
        %211 = vmatprep.subr.mxu0 0.0
        %212 = vmatpush1.msra.mxu0 0.0
        %213 = vmatprep.subr.mxu0 0.0
        %214 = vmatpush1.msra.mxu0 0.0
        %215 = vmatprep.subr.mxu0 0.0
        %216 = vmatpush1.msra.mxu0 0.0
        %217 = vmatprep.subr.mxu0 0.0
        %218 = vmatpush1.msra.mxu0 0.0
        %219 = vmatprep.subr.mxu0 0.0
        %220 = vmatpush1.msra.mxu0 %v177
        %221 = vmatprep.subr.mxu0 0.0
        %222 = vmatpush1.msra.mxu0 %v176
        %223 = vmatprep.subr.mxu0 0.0
        %224 = vmatpush2.msra.mxu0 0.0
        %225 = vmatprep.subr.mxu0 0.0
        %226 = vmatpush2.msra.mxu0 0.0
        %227 = vmatprep.subr.mxu0 0.0
        %228 = vmatpush2.msra.mxu0 0.0
        %229 = vmatprep.subr.mxu0 0.0
        %230 = vmatpush2.msra.mxu0 0.0
        %231 = vmatprep.subr.mxu0 0.0
        %232 = vmatpush2.msra.mxu0 0.0
        %233 = vmatprep.subr.mxu0 0.0
        %234 = vmatpush2.msra.mxu0 0.0
        %235 = vmatprep.subr.mxu0 0.0
        %236 = vmatpush2.msra.mxu0 0.0
        %237 = vmatprep.subr.mxu0 0.0
        %238 = vmatpush2.msra.mxu0 0.0
        %239 = vmatprep.subr.mxu0 0.0
        %240 = vmatpush2.msra.mxu0 0.0
        %241 = vmatprep.subr.mxu0 0.0
        %242 = vmatpush2.msra.mxu0 0.0
        %243 = vmatprep.subr.mxu0 0.0
        %244 = vmatpush2.msra.mxu0 0.0
        %245 = vmatprep.subr.mxu0 0.0
        %246 = vmatpush2.msra.mxu0 0.0
        %247 = vmatprep.subr.mxu0 0.0
        %248 = vmatpush2.msra.mxu0 0.0
        %249 = vmatprep.subr.mxu0 0.0
        %250 = vmatpush2.msra.mxu0 0.0
        %251 = vmatprep.subr.mxu0 0.0
        %252 = vmatpush2.msra.mxu0 0.0
        %253 = vmatprep.subr.mxu0 0.0
        %254 = vmatpush2.msra.mxu0 0.0
        %255 = vmatprep.mubr.f32.mxu0 0.0
        %256 = vmatmul.mubr.f32.gmra.mxu0 %v180
        %v257 = vpop.f32.mrf.mxu0
        %v258 = vadd.f32 0.0, %v257
        %v259 = vpop.f32.mrf.mxu0
        %260 = vmatprep.mubr.f32.mxu0 0.0
        %261 = vmatmul.mubr.f32.gmra.mxu0 %v183
        %v262 = vpop.f32.mrf.mxu0
        %v263 = vadd.f32 0.0, %v262
        %v264 = vpop.f32.mrf.mxu0
        %265 = vmatprep.mubr.f32.mxu0 0.0
        %266 = vmatmul.mubr.f32.gmra.mxu0 %v186
        %v267 = vpop.f32.mrf.mxu0
        %v268 = vadd.f32 0.0, %v267
        %v269 = vpop.f32.mrf.mxu0
        %270 = vmatprep.mubr.f32.mxu0 0.0
        %271 = vmatmul.mubr.f32.gmra.mxu0 %v189
        %v272 = vpop.f32.mrf.mxu0
        %v273 = vadd.f32 0.0, %v272
        %v274 = vpop.f32.mrf.mxu0
        %275 = vdwg.mxu0
        %v276 = vld [vmem:[%s1] sm:$0xff]
        %v277 = vld [vmem:[%s1 + $0x8] sm:$0xff]
        %v278 = vld [vmem:[%s1 + $0x10] sm:$0xff]
        %v279 = vld [vmem:[%s1 + $0x18] sm:$0xff]
        %v281 = vsel %vm178, %v276, 0
        %v284 = vsel %vm178, %v277, 0
        %v287 = vsel %vm178, %v278, 0
        %v290 = vsel %vm178, %v279, 0
        %292 = vmatprep.subr.mxu0 0.0
        %293 = vmatpush1.msra.mxu0 0.0
        %294 = vmatprep.subr.mxu0 0.0
        %295 = vmatpush1.msra.mxu0 0.0
        %296 = vmatprep.subr.mxu0 0.0
        %297 = vmatpush1.msra.mxu0 0.0
        %298 = vmatprep.subr.mxu0 0.0
        %299 = vmatpush1.msra.mxu0 0.0
        %300 = vmatprep.subr.mxu0 0.0
        %301 = vmatpush1.msra.mxu0 0.0
        %302 = vmatprep.subr.mxu0 0.0
        %303 = vmatpush1.msra.mxu0 0.0
        %304 = vmatprep.subr.mxu0 0.0
        %305 = vmatpush1.msra.mxu0 0.0
        %306 = vmatprep.subr.mxu0 0.0
        %307 = vmatpush1.msra.mxu0 0.0
        %308 = vmatprep.subr.mxu0 0.0
        %309 = vmatpush1.msra.mxu0 0.0
        %310 = vmatprep.subr.mxu0 0.0
        %311 = vmatpush1.msra.mxu0 0.0
        %312 = vmatprep.subr.mxu0 0.0
        %313 = vmatpush1.msra.mxu0 0.0
        %314 = vmatprep.subr.mxu0 0.0
        %315 = vmatpush1.msra.mxu0 0.0
        %316 = vmatprep.subr.mxu0 0.0
        %317 = vmatpush1.msra.mxu0 0.0
        %318 = vmatprep.subr.mxu0 0.0
        %319 = vmatpush1.msra.mxu0 0.0
        %320 = vmatprep.subr.mxu0 0.0
        %321 = vmatpush1.msra.mxu0 %v263
        %322 = vmatprep.subr.mxu0 0.0
        %323 = vmatpush1.msra.mxu0 %v258
        %324 = vmatprep.subr.mxu0 0.0
        %325 = vmatpush2.msra.mxu0 0.0
        %326 = vmatprep.subr.mxu0 0.0
        %327 = vmatpush2.msra.mxu0 0.0
        %328 = vmatprep.subr.mxu0 0.0
        %329 = vmatpush2.msra.mxu0 0.0
        %330 = vmatprep.subr.mxu0 0.0
        %331 = vmatpush2.msra.mxu0 0.0
        %332 = vmatprep.subr.mxu0 0.0
        %333 = vmatpush2.msra.mxu0 0.0
        %334 = vmatprep.subr.mxu0 0.0
        %335 = vmatpush2.msra.mxu0 0.0
        %336 = vmatprep.subr.mxu0 0.0
        %337 = vmatpush2.msra.mxu0 0.0
        %338 = vmatprep.subr.mxu0 0.0
        %339 = vmatpush2.msra.mxu0 0.0
        %340 = vmatprep.subr.mxu0 0.0
        %341 = vmatpush2.msra.mxu0 0.0
        %342 = vmatprep.subr.mxu0 0.0
        %343 = vmatpush2.msra.mxu0 0.0
        %344 = vmatprep.subr.mxu0 0.0
        %345 = vmatpush2.msra.mxu0 0.0
        %346 = vmatprep.subr.mxu0 0.0
        %347 = vmatpush2.msra.mxu0 0.0
        %348 = vmatprep.subr.mxu0 0.0
        %349 = vmatpush2.msra.mxu0 0.0
        %350 = vmatprep.subr.mxu0 0.0
        %351 = vmatpush2.msra.mxu0 0.0
        %352 = vmatprep.subr.mxu0 0.0
        %353 = vmatpush2.msra.mxu0 0.0
        %354 = vmatprep.subr.mxu0 0.0
        %355 = vmatpush2.msra.mxu0 0.0
        %356 = vmatprep.mubr.f32.mxu0 0.0
        %357 = vmatmul.mubr.f32.gmra.mxu0 %v281
        %v358 = vpop.f32.mrf.mxu0
        %v359 = vadd.f32 0.0, %v358
        %v360 = vpop.f32.mrf.mxu0
        %361 = vmatprep.mubr.f32.mxu0 0.0
        %362 = vmatmul.mubr.f32.gmra.mxu0 %v284
        %v363 = vpop.f32.mrf.mxu0
        %v364 = vadd.f32 0.0, %v363
        %v365 = vpop.f32.mrf.mxu0
        %366 = vmatprep.mubr.f32.mxu0 0.0
        %367 = vmatmul.mubr.f32.gmra.mxu0 %v287
        %v368 = vpop.f32.mrf.mxu0
        %v369 = vadd.f32 0.0, %v368
        %v370 = vpop.f32.mrf.mxu0
        %371 = vmatprep.mubr.f32.mxu0 0.0
        %372 = vmatmul.mubr.f32.gmra.mxu0 %v290
        %v373 = vpop.f32.mrf.mxu0
        %v374 = vadd.f32 0.0, %v373
        %v375 = vpop.f32.mrf.mxu0
        %376 = vdwg.mxu0
        %378 = vrot.lane.b32.xlu0 %v364, 32
        %v379 = vpop.permute.xlu0 %378
        %382 = vrot.lane.b32.xlu0 %v369, 64
        %v383 = vpop.permute.xlu0 %382
        %386 = vrot.lane.b32.xlu0 %v374, 96
        %v387 = vpop.permute.xlu0 %386
        %vm389 = vcmask 261120
        %v390 = vsel %vm389, %v359, %v379
        %vm391 = vcmask 523264
        %v392 = vsel %vm391, %v390, %v383
        %vm393 = vcmask 785408
        %v394 = vsel %vm393, %v392, %v387
        %395 = vst [vmem:[%s164] sm:$0xff] %v394
        %396 = vmatprep.subr.mxu0 0.0
        %397 = vmatpush1.msra.mxu0 0.0
        %398 = vmatprep.subr.mxu0 0.0
        %399 = vmatpush1.msra.mxu0 0.0
        %400 = vmatprep.subr.mxu0 0.0
        %401 = vmatpush1.msra.mxu0 0.0
        %402 = vmatprep.subr.mxu0 0.0
        %403 = vmatpush1.msra.mxu0 0.0
        %404 = vmatprep.subr.mxu0 0.0
        %405 = vmatpush1.msra.mxu0 0.0
        %406 = vmatprep.subr.mxu0 0.0
        %407 = vmatpush1.msra.mxu0 0.0
        %408 = vmatprep.subr.mxu0 0.0
        %409 = vmatpush1.msra.mxu0 0.0
        %410 = vmatprep.subr.mxu0 0.0
        %411 = vmatpush1.msra.mxu0 0.0
        %412 = vmatprep.subr.mxu0 0.0
        %413 = vmatpush1.msra.mxu0 0.0
        %414 = vmatprep.subr.mxu0 0.0
        %415 = vmatpush1.msra.mxu0 0.0
        %416 = vmatprep.subr.mxu0 0.0
        %417 = vmatpush1.msra.mxu0 0.0
        %418 = vmatprep.subr.mxu0 0.0
        %419 = vmatpush1.msra.mxu0 0.0
        %420 = vmatprep.subr.mxu0 0.0
        %421 = vmatpush1.msra.mxu0 0.0
        %422 = vmatprep.subr.mxu0 0.0
        %423 = vmatpush1.msra.mxu0 0.0
        %424 = vmatprep.subr.mxu0 0.0
        %425 = vmatpush1.msra.mxu0 %v273
        %426 = vmatprep.subr.mxu0 0.0
        %427 = vmatpush1.msra.mxu0 %v268
        %428 = vmatprep.subr.mxu0 0.0
        %429 = vmatpush2.msra.mxu0 0.0
        %430 = vmatprep.subr.mxu0 0.0
        %431 = vmatpush2.msra.mxu0 0.0
        %432 = vmatprep.subr.mxu0 0.0
        %433 = vmatpush2.msra.mxu0 0.0
        %434 = vmatprep.subr.mxu0 0.0
        %435 = vmatpush2.msra.mxu0 0.0
        %436 = vmatprep.subr.mxu0 0.0
        %437 = vmatpush2.msra.mxu0 0.0
        %438 = vmatprep.subr.mxu0 0.0
        %439 = vmatpush2.msra.mxu0 0.0
        %440 = vmatprep.subr.mxu0 0.0
        %441 = vmatpush2.msra.mxu0 0.0
        %442 = vmatprep.subr.mxu0 0.0
        %443 = vmatpush2.msra.mxu0 0.0
        %444 = vmatprep.subr.mxu0 0.0
        %445 = vmatpush2.msra.mxu0 0.0
        %446 = vmatprep.subr.mxu0 0.0
        %447 = vmatpush2.msra.mxu0 0.0
        %448 = vmatprep.subr.mxu0 0.0
        %449 = vmatpush2.msra.mxu0 0.0
        %450 = vmatprep.subr.mxu0 0.0
        %451 = vmatpush2.msra.mxu0 0.0
        %452 = vmatprep.subr.mxu0 0.0
        %453 = vmatpush2.msra.mxu0 0.0
        %454 = vmatprep.subr.mxu0 0.0
        %455 = vmatpush2.msra.mxu0 0.0
        %456 = vmatprep.subr.mxu0 0.0
        %457 = vmatpush2.msra.mxu0 0.0
        %458 = vmatprep.subr.mxu0 0.0
        %459 = vmatpush2.msra.mxu0 0.0
        %460 = vmatprep.mubr.f32.mxu0 0.0
        %461 = vmatmul.mubr.f32.gmra.mxu0 %v281
        %v462 = vpop.f32.mrf.mxu0
        %v463 = vadd.f32 0.0, %v462
        %v464 = vpop.f32.mrf.mxu0
        %465 = vmatprep.mubr.f32.mxu0 0.0
        %466 = vmatmul.mubr.f32.gmra.mxu0 %v284
        %v467 = vpop.f32.mrf.mxu0
        %v468 = vadd.f32 0.0, %v467
        %v469 = vpop.f32.mrf.mxu0
        %470 = vmatprep.mubr.f32.mxu0 0.0
        %471 = vmatmul.mubr.f32.gmra.mxu0 %v287
        %v472 = vpop.f32.mrf.mxu0
        %v473 = vadd.f32 0.0, %v472
        %v474 = vpop.f32.mrf.mxu0
        %475 = vmatprep.mubr.f32.mxu0 0.0
        %476 = vmatmul.mubr.f32.gmra.mxu0 %v290
        %v477 = vpop.f32.mrf.mxu0
        %v478 = vadd.f32 0.0, %v477
        %v479 = vpop.f32.mrf.mxu0
        %480 = vdwg.mxu0
        %482 = vrot.lane.b32.xlu0 %v468, 32
        %v483 = vpop.permute.xlu0 %482
        %486 = vrot.lane.b32.xlu0 %v473, 64
        %v487 = vpop.permute.xlu0 %486
        %490 = vrot.lane.b32.xlu0 %v478, 96
        %v491 = vpop.permute.xlu0 %490
        %v493 = vsel %vm389, %v463, %v483
        %v494 = vsel %vm391, %v493, %v487
        %v495 = vsel %vm393, %v494, %v491
        %496 = vst [vmem:[%s164 + $0x8] sm:$0xff] %v495
        %s497 = sand.u32 %s93, 1
        %s498 = scalar_lea.sflag [#allocation3], %s497
        %s499 = sand.u32 %s93, 1
        %s500 = smul.addr %s499, 16
        %s501 = scalar_lea.vmem [#allocation2], %s500
        // Predicated region
        $region33: #{tpu_custom_call.1} parent=31 // pred_check
          %p502 = pneg %p103
        $region34: #{tpu_custom_call.1} parent=31 // pred_check_branch
          %504 = sbr.rel (%p502) target = $region36
        $region35: #{tpu_custom_call.1} parent=31 // pred_region
          %s505 = smul.u32 2, %s17
          %s507 = ssub.s32 256, 256
          %508 = vsyncadd %s498, %s507
          %s509 = smul.addr %s505, 128
          %s510 = scalar_lea.hbm %s3, %s509
          %s511 = sshll.u32 %s501, 4
          %s512 = int_to_ptr.vmem [resolvable:$true] %s511
          %517 = dma.vmem_to_hbm [thread:$0]  %s512, 256, %s510, %s498, 128, 128, 8
        $region36: #{tpu_custom_call.1} parent=31 // pred_fallthru
          _
      $region32: #{tpu_custom_call.1} parent=5 // pred_fallthru
        _
      %p518 = scmp.le.s32.totalorder 2, %s12
      // Predicated region
      $region37: #{tpu_custom_call.1} parent=5 // pred_check
        %p519 = pneg %p518
      $region38: #{tpu_custom_call.1} parent=5 // pred_check_branch
        %521 = sbr.rel (%p519) target = $region40
      $region39: #{tpu_custom_call.1} parent=5 // pred_region
        %s522 = ssub.s32 %s12, 2
        // Predicated region
        $region41: #{tpu_custom_call.1} parent=39 // pred_check
          %p523 = pneg %p109
        $region42: #{tpu_custom_call.1} parent=39 // pred_check_branch
          %525 = sbr.rel (%p523) target = $region44
        $region43: #{tpu_custom_call.1} parent=39 // pred_region
          %s526 = sand.u32 %s94, 1
          %s527 = scalar_lea.sflag [#allocation3], %s526
          %s528 = sand.u32 %s94, 1
          %s529 = smul.addr %s528, 16
          %s530 = scalar_lea.vmem [#allocation2], %s529
          %531 = dma.done %s527, 256
        $region44: #{tpu_custom_call.1} parent=39 // pred_fallthru
          _
      $region40: #{tpu_custom_call.1} parent=5 // pred_fallthru
        _
    $region6: #{tpu_custom_call.1} parent=1 // loop_footer
      %s16 = sadd.s32 1, %s12
    $region7: #{tpu_custom_call.1} parent=1 // loop_footer_branch
      %11 = sbr.rel target = $region3
    $region8: #{tpu_custom_call.1} parent=1 // loop_exit
      _
    %532 = vsyncpa [#allocation3], 1
    %s533 = scalar_lea.sflag [#allocation3], 1
    %534 = vsyncpa %s533, 1

</llo_original>
